<compile_context>
chip_gen: v7x
topology: tpu7x:2x2x1
jax: 0.10.0
libtpu: 0.0.40
codegen_flags: <defaults>
</compile_context>

<pallas_src>
import numpy as np

import jax
import jax.numpy as jnp
from jax.experimental import pallas as pl
from jax.experimental.pallas import tpu as pltpu

B, C, H, W = 2, 32, 16, 16          # c1 = 32, reduction = 16 -> mid = 2
HW = H * W
REDUCTION = 16
MID = C // REDUCTION
K = 7                               # spatial-attention conv kernel size
PAD = 3


def cbam_kernel(x_ref, w1_ref, b1_ref, w2_ref, b2_ref, band_ref, cb_ref, o_ref):
    x = x_ref[...].astype(jnp.float32)                     # (B, C, HW)

    # ---------------- Channel attention (transposed: C on sublanes) -----------
    avg_k = jnp.mean(x, axis=2, keepdims=True)             # (B, C, 1) lane reduce
    max_k = jnp.max(x, axis=2, keepdims=True)              # (B, C, 1)
    # pooled^T: (C, 2B), columns = [avg_b0..avg_b{B-1}, max_b0..max_b{B-1}]
    pooled_t = jnp.concatenate(
        [avg_k[b] for b in range(B)] + [max_k[b] for b in range(B)], axis=1)

    # shared MLP, both pooling paths and both batch rows in one matmul per layer
    h_t = jnp.maximum(
        jnp.dot(w1_ref[...], pooled_t, preferred_element_type=jnp.float32)
        + b1_ref[...], 0.0)                                # (MID, 2B)
    mlp_t = (jnp.dot(w2_ref[...], h_t, preferred_element_type=jnp.float32)
             + b2_ref[...])                                # (C, 2B)
    ca_t = jax.nn.sigmoid(mlp_t[:, :B] + mlp_t[:, B:])     # (C, B)

    # channel gate: per-batch lane-broadcast multiply (no lanes->sublanes relayout)
    out1 = jnp.stack([x[b] * ca_t[:, b:b + 1] for b in range(B)], axis=0)  # (B, C, HW)

    # ---------------- Spatial attention: 7x7 conv as one banded MXU matmul ----
    avg_s = jnp.mean(out1, axis=1)                         # (B, HW) channel mean
    max_s = jnp.max(out1, axis=1)                          # (B, HW) channel max
    stacked = jnp.concatenate([avg_s, max_s], axis=1)      # (B, 2*HW)

    # band_ref already encodes the 49 taps (both channels) and zero-padding masks
    conv = jnp.dot(stacked, band_ref[...],
                   preferred_element_type=jnp.float32)     # (B, HW)
    sa = jax.nn.sigmoid(conv + cb_ref[0])                  # (B, HW)

    o_ref[...] = (out1 * sa[:, None, :]).astype(o_ref.dtype)


def build_spatial_band(conv_w, h, w):
    """Banded (2*HW, HW) matrix encoding the 7x7 conv (2->1 ch) + zero padding.

    conv_out[b, oi*w + oj] = sum_r stacked[b, r] * band[r, oi*w + oj],
    with stacked = [avg_flat | max_flat] along lanes.
    """
    hw = h * w
    cw = np.asarray(conv_w, dtype=np.float32).reshape(2, K, K)
    band = np.zeros((2 * hw, hw), dtype=np.float32)
    out_k = np.arange(hw)
    oi, oj = np.divmod(out_k, w)                           # output pixel coords
    for dy in range(K):
        for dx in range(K):
            ii = oi + dy - PAD
            ij = oj + dx - PAD
            valid = (ii >= 0) & (ii < h) & (ij >= 0) & (ij < w)
            in_k = (ii * w + ij)[valid]
            ok = out_k[valid]
            band[in_k, ok] += cw[0, dy, dx]                # avg channel
            band[hw + in_k, ok] += cw[1, dy, dx]           # max channel
    return band


def cbam_pallas(x, w1, b1, w2, b2, conv_w, conv_b):
    Bx, Cx, Hx, Wx = x.shape
    mid = w1.shape[0]
    x3 = x.reshape(Bx, Cx, Hx * Wx)                        # lane-dense last dim
    band = jnp.asarray(build_spatial_band(conv_w, Hx, Wx)) # (2*HW, HW) f32

    out3 = pl.pallas_call(
        cbam_kernel,
        out_shape=jax.ShapeDtypeStruct(x3.shape, x.dtype),
        in_specs=[
            pl.BlockSpec(memory_space=pltpu.MemorySpace.VMEM),   # x (B, C, HW)
            pl.BlockSpec(memory_space=pltpu.MemorySpace.VMEM),   # w1 (MID, C)
            pl.BlockSpec(memory_space=pltpu.MemorySpace.VMEM),   # b1 col (MID, 1)
            pl.BlockSpec(memory_space=pltpu.MemorySpace.VMEM),   # w2 (C, MID)
            pl.BlockSpec(memory_space=pltpu.MemorySpace.VMEM),   # b2 col (C, 1)
            pl.BlockSpec(memory_space=pltpu.MemorySpace.VMEM),   # band (2HW, HW)
            pl.BlockSpec(memory_space=pltpu.MemorySpace.SMEM),   # conv bias (1,)
        ],
        out_specs=pl.BlockSpec(memory_space=pltpu.MemorySpace.VMEM),
    )(x3, w1, b1.reshape(mid, 1), w2, b2.reshape(Cx, 1), band, conv_b)
    return out3.reshape(x.shape)


def cbam_reference(x, w1, b1, w2, b2, conv_w, conv_b):
    """Pure-JAX reference mirroring the PyTorch forward."""
    xf = x.astype(jnp.float32)
    avg = jnp.mean(xf, axis=(2, 3))                        # (B, C)
    mx = jnp.max(xf, axis=(2, 3))                          # (B, C)

    def mlp(v):
        h = jnp.maximum(v @ w1.T + b1, 0.0)
        return h @ w2.T + b2

    ca = jax.nn.sigmoid(mlp(avg) + mlp(mx))[:, :, None, None]
    out1 = ca * xf

    avg_s = jnp.mean(out1, axis=1, keepdims=True)
    max_s = jnp.max(out1, axis=1, keepdims=True)
    sp_in = jnp.concatenate([avg_s, max_s], axis=1)        # (B, 2, H, W)
    conv = jax.lax.conv_general_dilated(
        sp_in, conv_w, window_strides=(1, 1),
        padding=((PAD, PAD), (PAD, PAD)),
        dimension_numbers=("NCHW", "OIHW", "NCHW"))
    sa = jax.nn.sigmoid(conv + conv_b[0])
    return out1 * sa


if __name__ == "__main__":
    key = jax.random.PRNGKey(0)
    kx, k1, k2, k3, k4, k5, k6 = jax.random.split(key, 7)

    x = jax.random.normal(kx, (B, C, H, W), dtype=jnp.float32)

    # Deterministic synthetic parameters (shapes follow the nn.Module __init__).
    w1 = 0.2 * jax.random.normal(k1, (MID, C), dtype=jnp.float32)          # Linear(c1 -> mid)
    b1 = 0.1 * jax.random.normal(k2, (MID,), dtype=jnp.float32)
    w2 = 0.2 * jax.random.normal(k3, (C, MID), dtype=jnp.float32)          # Linear(mid -> c1)
    b2 = 0.1 * jax.random.normal(k4, (C,), dtype=jnp.float32)
    conv_w = 0.2 * jax.random.normal(k5, (1, 2, K, K), dtype=jnp.float32)  # Conv2d(2,1,7,7)
    conv_b = 0.1 * jax.random.normal(k6, (1,), dtype=jnp.float32)

    out = cbam_pallas(x, w1, b1, w2, b2, conv_w, conv_b)
    out = jax.block_until_ready(out)

    ref = cbam_reference(x, w1, b1, w2, b2, conv_w, conv_b)
    assert out.shape == (B, C, H, W)
    assert jnp.allclose(out, ref, rtol=1e-4, atol=1e-4), "mismatch vs reference"

    print("KERNEL_OK")
</pallas_src>

<mosaic_0001>
module attributes {stable_mosaic.version = 11 : i64} {
  func.func @cbam_kernel(%arg0: memref<2x32x256xf32, #tpu.memory_space<vmem>>, %arg1: memref<2x32xf32, #tpu.memory_space<vmem>>, %arg2: memref<2x1xf32, #tpu.memory_space<vmem>>, %arg3: memref<32x2xf32, #tpu.memory_space<vmem>>, %arg4: memref<32x1xf32, #tpu.memory_space<vmem>>, %arg5: memref<512x256xf32, #tpu.memory_space<vmem>>, %arg6: memref<1xf32, #tpu.memory_space<smem>>, %arg7: memref<2x32x256xf32, #tpu.memory_space<vmem>>) attributes {dimension_semantics = [], scalar_prefetch = 0 : i64, scratch_operands = 0 : i64, tpu.core_type = #tpu.core_type<tc>} {
    %c0 = arith.constant 0 : index
    %c0_0 = arith.constant 0 : index
    %c0_1 = arith.constant 0 : index
    %0 = vector.load %arg0[%c0, %c0_0, %c0_1] : memref<2x32x256xf32, #tpu.memory_space<vmem>>, vector<2x32x256xf32>
    %cst = arith.constant dense<0.000000e+00> : vector<2x32xf32>
    %1 = vector.multi_reduction <add>, %0, %cst [2] : vector<2x32x256xf32> to vector<2x32xf32>
    %2 = vector.shape_cast %1 : vector<2x32xf32> to vector<2x32x1xf32>
    %cst_2 = arith.constant 2.560000e+02 : f32
    %3 = vector.broadcast %cst_2 : f32 to vector<2x32x1xf32>
    %4 = arith.divf %2, %3 : vector<2x32x1xf32>
    %cst_3 = arith.constant dense<0xFF800000> : vector<2x32xf32>
    %5 = vector.multi_reduction <maximumf>, %0, %cst_3 [2] : vector<2x32x256xf32> to vector<2x32xf32>
    %6 = vector.shape_cast %5 : vector<2x32xf32> to vector<2x32x1xf32>
    %7 = vector.extract_strided_slice %4 {offsets = [0, 0, 0], sizes = [1, 32, 1], strides = [1, 1, 1]} : vector<2x32x1xf32> to vector<1x32x1xf32>
    %8 = vector.shape_cast %7 : vector<1x32x1xf32> to vector<32x1xf32>
    %9 = vector.extract_strided_slice %4 {offsets = [1, 0, 0], sizes = [1, 32, 1], strides = [1, 1, 1]} : vector<2x32x1xf32> to vector<1x32x1xf32>
    %10 = vector.shape_cast %9 : vector<1x32x1xf32> to vector<32x1xf32>
    %11 = vector.extract_strided_slice %6 {offsets = [0, 0, 0], sizes = [1, 32, 1], strides = [1, 1, 1]} : vector<2x32x1xf32> to vector<1x32x1xf32>
    %12 = vector.shape_cast %11 : vector<1x32x1xf32> to vector<32x1xf32>
    %13 = vector.extract_strided_slice %6 {offsets = [1, 0, 0], sizes = [1, 32, 1], strides = [1, 1, 1]} : vector<2x32x1xf32> to vector<1x32x1xf32>
    %14 = vector.shape_cast %13 : vector<1x32x1xf32> to vector<32x1xf32>
    %15 = tpu.concatenate %8, %10, %12, %14 in 1 : vector<32x1xf32>, vector<32x1xf32>, vector<32x1xf32>, vector<32x1xf32> -> vector<32x4xf32>
    %c0_4 = arith.constant 0 : index
    %c0_5 = arith.constant 0 : index
    %16 = vector.load %arg1[%c0_4, %c0_5] : memref<2x32xf32, #tpu.memory_space<vmem>>, vector<2x32xf32>
    %cst_6 = arith.constant dense<0.000000e+00> : vector<2x4xf32>
    %17 = tpu.matmul %16, %15, %cst_6 {dimension_numbers = #tpu.dot_dimension_numbers<[1], [0], [0], [1], [0, 0, 1, 1], [], []>} : vector<2x32xf32>, vector<32x4xf32>, vector<2x4xf32> -> vector<2x4xf32>
    %c0_7 = arith.constant 0 : index
    %c0_8 = arith.constant 0 : index
    %18 = vector.load %arg2[%c0_7, %c0_8] : memref<2x1xf32, #tpu.memory_space<vmem>>, vector<2x1xf32>
    %19 = vector.broadcast %18 : vector<2x1xf32> to vector<2x4xf32>
    %20 = arith.addf %17, %19 : vector<2x4xf32>
    %cst_9 = arith.constant 0.000000e+00 : f32
    %21 = vector.broadcast %cst_9 : f32 to vector<2x4xf32>
    %22 = arith.maximumf %20, %21 : vector<2x4xf32>
    %c0_10 = arith.constant 0 : index
    %c0_11 = arith.constant 0 : index
    %23 = vector.load %arg3[%c0_10, %c0_11] : memref<32x2xf32, #tpu.memory_space<vmem>>, vector<32x2xf32>
    %cst_12 = arith.constant dense<0.000000e+00> : vector<32x4xf32>
    %24 = tpu.matmul %23, %22, %cst_12 {dimension_numbers = #tpu.dot_dimension_numbers<[1], [0], [0], [1], [0, 0, 1, 1], [], []>} : vector<32x2xf32>, vector<2x4xf32>, vector<32x4xf32> -> vector<32x4xf32>
    %c0_13 = arith.constant 0 : index
    %c0_14 = arith.constant 0 : index
    %25 = vector.load %arg4[%c0_13, %c0_14] : memref<32x1xf32, #tpu.memory_space<vmem>>, vector<32x1xf32>
    %26 = vector.broadcast %25 : vector<32x1xf32> to vector<32x4xf32>
    %27 = arith.addf %24, %26 : vector<32x4xf32>
    %28 = vector.extract_strided_slice %27 {offsets = [0, 0], sizes = [32, 2], strides = [1, 1]} : vector<32x4xf32> to vector<32x2xf32>
    %29 = vector.extract_strided_slice %27 {offsets = [0, 2], sizes = [32, 2], strides = [1, 1]} : vector<32x4xf32> to vector<32x2xf32>
    %30 = arith.addf %28, %29 : vector<32x2xf32>
    %31 = arith.negf %30 : vector<32x2xf32>
    %32 = math.exp %31 : vector<32x2xf32>
    %cst_15 = arith.constant 1.000000e+00 : f32
    %33 = vector.broadcast %cst_15 : f32 to vector<32x2xf32>
    %34 = arith.addf %33, %32 : vector<32x2xf32>
    %35 = arith.divf %33, %34 : vector<32x2xf32>
    %36 = vector.extract_strided_slice %0 {offsets = [0, 0, 0], sizes = [1, 32, 256], strides = [1, 1, 1]} : vector<2x32x256xf32> to vector<1x32x256xf32>
    %37 = vector.shape_cast %36 : vector<1x32x256xf32> to vector<32x256xf32>
    %38 = vector.extract_strided_slice %35 {offsets = [0, 0], sizes = [32, 1], strides = [1, 1]} : vector<32x2xf32> to vector<32x1xf32>
    %39 = vector.broadcast %38 : vector<32x1xf32> to vector<32x256xf32>
    %40 = arith.mulf %37, %39 : vector<32x256xf32>
    %41 = vector.extract_strided_slice %0 {offsets = [1, 0, 0], sizes = [1, 32, 256], strides = [1, 1, 1]} : vector<2x32x256xf32> to vector<1x32x256xf32>
    %42 = vector.shape_cast %41 : vector<1x32x256xf32> to vector<32x256xf32>
    %43 = vector.extract_strided_slice %35 {offsets = [0, 1], sizes = [32, 1], strides = [1, 1]} : vector<32x2xf32> to vector<32x1xf32>
    %44 = vector.broadcast %43 : vector<32x1xf32> to vector<32x256xf32>
    %45 = arith.mulf %42, %44 : vector<32x256xf32>
    %46 = vector.shape_cast %40 : vector<32x256xf32> to vector<1x32x256xf32>
    %47 = vector.shape_cast %45 : vector<32x256xf32> to vector<1x32x256xf32>
    %48 = tpu.concatenate %46, %47 in 0 : vector<1x32x256xf32>, vector<1x32x256xf32> -> vector<2x32x256xf32>
    %cst_16 = arith.constant dense<0.000000e+00> : vector<2x256xf32>
    %49 = vector.multi_reduction <add>, %48, %cst_16 [1] : vector<2x32x256xf32> to vector<2x256xf32>
    %cst_17 = arith.constant 3.200000e+01 : f32
    %50 = vector.broadcast %cst_17 : f32 to vector<2x256xf32>
    %51 = arith.divf %49, %50 : vector<2x256xf32>
    %cst_18 = arith.constant dense<0xFF800000> : vector<2x256xf32>
    %52 = vector.multi_reduction <maximumf>, %48, %cst_18 [1] : vector<2x32x256xf32> to vector<2x256xf32>
    %53 = tpu.concatenate %51, %52 in 1 : vector<2x256xf32>, vector<2x256xf32> -> vector<2x512xf32>
    %c0_19 = arith.constant 0 : index
    %c0_20 = arith.constant 0 : index
    %54 = vector.load %arg5[%c0_19, %c0_20] : memref<512x256xf32, #tpu.memory_space<vmem>>, vector<512x256xf32>
    %cst_21 = arith.constant dense<0.000000e+00> : vector<2x256xf32>
    %55 = tpu.matmul %53, %54, %cst_21 {dimension_numbers = #tpu.dot_dimension_numbers<[1], [0], [0], [1], [0, 0, 1, 1], [], []>} : vector<2x512xf32>, vector<512x256xf32>, vector<2x256xf32> -> vector<2x256xf32>
    %c0_22 = arith.constant 0 : index
    %56 = memref.load %arg6[%c0_22] : memref<1xf32, #tpu.memory_space<smem>>
    %57 = vector.broadcast %56 : f32 to vector<2x256xf32>
    %58 = arith.addf %55, %57 : vector<2x256xf32>
    %59 = arith.negf %58 : vector<2x256xf32>
    %60 = math.exp %59 : vector<2x256xf32>
    %cst_23 = arith.constant 1.000000e+00 : f32
    %61 = vector.broadcast %cst_23 : f32 to vector<2x256xf32>
    %62 = arith.addf %61, %60 : vector<2x256xf32>
    %63 = arith.divf %61, %62 : vector<2x256xf32>
    %64 = vector.shape_cast %63 : vector<2x256xf32> to vector<2x1x256xf32>
    %65 = vector.broadcast %64 : vector<2x1x256xf32> to vector<2x32x256xf32>
    %66 = arith.mulf %48, %65 : vector<2x32x256xf32>
    %c0_24 = arith.constant 0 : index
    %c0_25 = arith.constant 0 : index
    %c0_26 = arith.constant 0 : index
    %67 = vector.load %arg7[%c0_24, %c0_25, %c0_26] : memref<2x32x256xf32, #tpu.memory_space<vmem>>, vector<2x32x256xf32>
    tpu.vector_store %arg7[%c0_24, %c0_25, %c0_26], %66 {strides = array<i32>} : memref<2x32x256xf32, #tpu.memory_space<vmem>>, vector<2x32x256xf32>,
    return
  }
}

</mosaic_0001>

<llo_original>
// kernel: tpu_custom_call.1
$region0: #{tpu_custom_call.1}
  #allocation0 [shape = 'u32[]', space=smem, size = 0x4, offset = 0x4, fixed_abs, tag = 'smem constant byte address 0x4 - core index']
  #allocation1 [shape = 'u32[144,128]{1,0:T(1,128)}', space=vmem, size = 0x12000, scoped, tag = 'internal scratch']
  #allocation2 [shape = 'f32[1]{0:T(128)S(6)}', space=smem, size = 0x200, scoped, tag = 'scoped memory for tpu_custom_call.1']
  %s0 = inlined_call_operand.hbm [shape: f32[2,32,256], index: 0, kind: input, shape index: {}]
  %s1 = inlined_call_operand.vmem [shape: f32[2,32], index: 1, kind: input, shape index: {}]
  %s2 = inlined_call_operand.vmem [shape: f32[2,1], index: 2, kind: input, shape index: {}]
  %s3 = inlined_call_operand.vmem [shape: f32[32,2], index: 3, kind: input, shape index: {}]
  %s4 = inlined_call_operand.vmem [shape: f32[32,1], index: 4, kind: input, shape index: {}]
  %s5 = inlined_call_operand.hbm [shape: f32[512,256], index: 5, kind: input, shape index: {}]
  %s6 = inlined_call_operand.<no memory space> [shape: f32[1], index: 6, kind: input, shape index: {}]
  %s7 = inlined_call_operand.hbm [shape: f32[2,32,256], index: 7, kind: output, shape index: {}]
  %s8 = sld [smem:[#allocation0]]
  $region46: #{tpu_custom_call.1} parent=0
    _
  %s10 = ssub.s32 1, %s8
  %s11 = scalar_select 0, %s10, %s8
  %12 = sst [smem:[#allocation2]] %s6
  $region1: #{tpu_custom_call.1} parent=0
    #allocation3 [shape = 'u8[65536]{0}', space=vmem, size = 0x10000, scoped, tag = 'input window, operand 0, single buffered']
    #allocation4 [shape = 's32[1]{0}', space=sflag, size = 0x4, scoped, tag = 'scoped memory for tpu_custom_call.1']
    #allocation5 [shape = 's32[1]{0}', space=sflag, size = 0x4, scoped, tag = 'scoped memory for tpu_custom_call.1']
    #allocation6 [shape = 'u8[524288]{0}', space=vmem, size = 0x80000, scoped, tag = 'input window, operand 5, single buffered']
    #allocation7 [shape = 's32[1]{0}', space=sflag, size = 0x4, scoped, tag = 'scoped memory for tpu_custom_call.1']
    #allocation8 [shape = 'u8[65536]{0}', space=vmem, size = 0x10000, scoped, tag = 'output window, operand 0, single buffered']
    %13 = vsyncpa [#allocation4], 0
    %14 = vsyncpa [#allocation7], 0
    %15 = vsyncpa [#allocation5], 0
    // Predicated region
    $region2: #{tpu_custom_call.1} parent=1 // pred_check
      _
    $region3: #{tpu_custom_call.1} parent=1 // pred_check_branch
      %17 = sbr.rel (0) target = $region5
    $region4: #{tpu_custom_call.1} parent=1 // pred_region
      %s19 = ssub.s32 2048, 2048
      %20 = vsyncadd [#allocation4], %s19
      %s21 = sshll.u32 [#allocation3], 4
      %s22 = int_to_ptr.vmem [resolvable:$true] %s21
      %27 = dma.hbm_to_vmem [thread:$0]  %s0, 2048, %s22, [#allocation4], 256, 256, 16
    $region5: #{tpu_custom_call.1} parent=1 // pred_fallthru
      _
    // Predicated region
    $region6: #{tpu_custom_call.1} parent=1 // pred_check
      _
    $region7: #{tpu_custom_call.1} parent=1 // pred_check_branch
      %29 = sbr.rel (0) target = $region9
    $region8: #{tpu_custom_call.1} parent=1 // pred_region
      _
    $region9: #{tpu_custom_call.1} parent=1 // pred_fallthru
      _
    // Predicated region
    $region10: #{tpu_custom_call.1} parent=1 // pred_check
      _
    $region11: #{tpu_custom_call.1} parent=1 // pred_check_branch
      %31 = sbr.rel (0) target = $region13
    $region12: #{tpu_custom_call.1} parent=1 // pred_region
      _
    $region13: #{tpu_custom_call.1} parent=1 // pred_fallthru
      _
    // Predicated region
    $region14: #{tpu_custom_call.1} parent=1 // pred_check
      _
    $region15: #{tpu_custom_call.1} parent=1 // pred_check_branch
      %33 = sbr.rel (0) target = $region17
    $region16: #{tpu_custom_call.1} parent=1 // pred_region
      _
    $region17: #{tpu_custom_call.1} parent=1 // pred_fallthru
      _
    // Predicated region
    $region18: #{tpu_custom_call.1} parent=1 // pred_check
      _
    $region19: #{tpu_custom_call.1} parent=1 // pred_check_branch
      %35 = sbr.rel (0) target = $region21
    $region20: #{tpu_custom_call.1} parent=1 // pred_region
      _
    $region21: #{tpu_custom_call.1} parent=1 // pred_fallthru
      _
    // Predicated region
    $region22: #{tpu_custom_call.1} parent=1 // pred_check
      _
    $region23: #{tpu_custom_call.1} parent=1 // pred_check_branch
      %37 = sbr.rel (0) target = $region25
    $region24: #{tpu_custom_call.1} parent=1 // pred_region
      %s39 = ssub.s32 16384, 16384
      %40 = vsyncadd [#allocation7], %s39
      %s41 = sshll.u32 [#allocation6], 4
      %s42 = int_to_ptr.vmem [resolvable:$true] %s41
      %47 = dma.hbm_to_vmem [thread:$0]  %s5, 16384, %s42, [#allocation7], 256, 256, 16
    $region25: #{tpu_custom_call.1} parent=1 // pred_fallthru
      _
    // Predicated region
    $region26: #{tpu_custom_call.1} parent=1 // pred_check
      _
    $region27: #{tpu_custom_call.1} parent=1 // pred_check_branch
      %49 = sbr.rel (0) target = $region29
    $region28: #{tpu_custom_call.1} parent=1 // pred_region
      _
    $region29: #{tpu_custom_call.1} parent=1 // pred_fallthru
      _
    // Predicated region
    $region30: #{tpu_custom_call.1} parent=1 // pred_check
      _
    $region31: #{tpu_custom_call.1} parent=1 // pred_check_branch
      %51 = sbr.rel (0) target = $region33
    $region32: #{tpu_custom_call.1} parent=1 // pred_region
      %52 = dma.done [#allocation4], 2048
    $region33: #{tpu_custom_call.1} parent=1 // pred_fallthru
      _
    // Predicated region
    $region34: #{tpu_custom_call.1} parent=1 // pred_check
      _
    $region35: #{tpu_custom_call.1} parent=1 // pred_check_branch
      %54 = sbr.rel (0) target = $region37
    $region36: #{tpu_custom_call.1} parent=1 // pred_region
      %55 = dma.done [#allocation7], 16384
    $region37: #{tpu_custom_call.1} parent=1 // pred_fallthru
      _
    %v56 = vld [vmem:[#allocation3] sm:$0xff]
    %v57 = vld [vmem:[#allocation3 + $0x8] sm:$0xff]
    %v58 = vld [vmem:[#allocation3 + $0x10] sm:$0xff]
    %v59 = vld [vmem:[#allocation3 + $0x18] sm:$0xff]
    %v60 = vld [vmem:[#allocation3 + $0x20] sm:$0xff]
    %v61 = vld [vmem:[#allocation3 + $0x28] sm:$0xff]
    %v62 = vld [vmem:[#allocation3 + $0x30] sm:$0xff]
    %v63 = vld [vmem:[#allocation3 + $0x38] sm:$0xff]
    %v64 = vld [vmem:[#allocation3 + $0x40] sm:$0xff]
    %v65 = vld [vmem:[#allocation3 + $0x48] sm:$0xff]
    %v66 = vld [vmem:[#allocation3 + $0x50] sm:$0xff]
    %v67 = vld [vmem:[#allocation3 + $0x58] sm:$0xff]
    %v68 = vld [vmem:[#allocation3 + $0x60] sm:$0xff]
    %v69 = vld [vmem:[#allocation3 + $0x68] sm:$0xff]
    %v70 = vld [vmem:[#allocation3 + $0x70] sm:$0xff]
    %v71 = vld [vmem:[#allocation3 + $0x78] sm:$0xff]
    %v72 = vadd.f32 %v56, %v57
    %73 = vadd.xlane.f32.xlu0 %v72
    %v74 = vpop.xlane.xlu0 %73
    %v75 = vadd.f32 %v58, %v59
    %76 = vadd.xlane.f32.xlu0 %v75
    %v77 = vpop.xlane.xlu0 %76
    %v78 = vadd.f32 %v60, %v61
    %79 = vadd.xlane.f32.xlu0 %v78
    %v80 = vpop.xlane.xlu0 %79
    %v81 = vadd.f32 %v62, %v63
    %82 = vadd.xlane.f32.xlu0 %v81
    %v83 = vpop.xlane.xlu0 %82
    %v84 = vadd.f32 %v64, %v65
    %85 = vadd.xlane.f32.xlu0 %v84
    %v86 = vpop.xlane.xlu0 %85
    %v87 = vadd.f32 %v66, %v67
    %88 = vadd.xlane.f32.xlu0 %v87
    %v89 = vpop.xlane.xlu0 %88
    %v90 = vadd.f32 %v68, %v69
    %91 = vadd.xlane.f32.xlu0 %v90
    %v92 = vpop.xlane.xlu0 %91
    %v93 = vadd.f32 %v70, %v71
    %94 = vadd.xlane.f32.xlu0 %v93
    %v95 = vpop.xlane.xlu0 %94
    %v96 = vrcp.pop 256.0
    %v97 = vmul.f32 %v74, %v96
    %v98 = vmul.f32 %v77, %v96
    %v99 = vmul.f32 %v80, %v96
    %v100 = vmul.f32 %v83, %v96
    %v101 = vmul.f32 %v86, %v96
    %v102 = vmul.f32 %v89, %v96
    %v103 = vmul.f32 %v92, %v96
    %v104 = vmul.f32 %v95, %v96
    %v105 = vmax.f32 %v56, %v57
    %106 = vmax.xlane.f32.xlu0 %v105
    %v107 = vpop.xlane.xlu0 %106
    %v108 = vmax.f32 %v58, %v59
    %109 = vmax.xlane.f32.xlu0 %v108
    %v110 = vpop.xlane.xlu0 %109
    %v111 = vmax.f32 %v60, %v61
    %112 = vmax.xlane.f32.xlu0 %v111
    %v113 = vpop.xlane.xlu0 %112
    %v114 = vmax.f32 %v62, %v63
    %115 = vmax.xlane.f32.xlu0 %v114
    %v116 = vpop.xlane.xlu0 %115
    %v117 = vmax.f32 %v64, %v65
    %118 = vmax.xlane.f32.xlu0 %v117
    %v119 = vpop.xlane.xlu0 %118
    %v120 = vmax.f32 %v66, %v67
    %121 = vmax.xlane.f32.xlu0 %v120
    %v122 = vpop.xlane.xlu0 %121
    %v123 = vmax.f32 %v68, %v69
    %124 = vmax.xlane.f32.xlu0 %v123
    %v125 = vpop.xlane.xlu0 %124
    %v126 = vmax.f32 %v70, %v71
    %127 = vmax.xlane.f32.xlu0 %v126
    %v128 = vpop.xlane.xlu0 %127
    %vm129 = vcmask 7168
    %v130 = vsel %vm129, %v97, %v101
    %v131 = vsel %vm129, %v98, %v102
    %v132 = vsel %vm129, %v99, %v103
    %v133 = vsel %vm129, %v100, %v104
    %vm134 = vcmask 15360
    %v135 = vsel %vm134, %v130, %v107
    %v136 = vsel %vm134, %v131, %v110
    %v137 = vsel %vm134, %v132, %v113
    %v138 = vsel %vm134, %v133, %v116
    %vm139 = vcmask 23552
    %v140 = vsel %vm139, %v135, %v119
    %v141 = vsel %vm139, %v136, %v122
    %v142 = vsel %vm139, %v137, %v125
    %v143 = vsel %vm139, %v138, %v128
    %v144 = vld [vmem:[%s1] sm:$0x3]
    %v145 = vld [vmem:[%s2] sm:$0x3]
    %147 = vset.pattern.permute.xlu0 0
    %148 = vperm.xlu0 %147, %v145
    %v149 = vpop.permute.xlu0 %148
    %vm151 = vcmask 261120
    %v153 = vsel %vm151, %v144, 0
    %155 = vmatprep.subr.mxu0 0.0
    %156 = vmatpush1.msra.mxu0 %v140
    %157 = vmatprep.subr.mxu0 0.0
    %158 = vmatpush1.msra.mxu0 %v141
    %159 = vmatprep.subr.mxu0 0.0
    %160 = vmatpush1.msra.mxu0 %v142
    %161 = vmatprep.subr.mxu0 0.0
    %162 = vmatpush1.msra.mxu0 %v143
    %163 = vmatprep.subr.mxu0 0.0
    %164 = vmatpush1.msra.mxu0 0.0
    %165 = vmatprep.subr.mxu0 0.0
    %166 = vmatpush1.msra.mxu0 0.0
    %167 = vmatprep.subr.mxu0 0.0
    %168 = vmatpush1.msra.mxu0 0.0
    %169 = vmatprep.subr.mxu0 0.0
    %170 = vmatpush1.msra.mxu0 0.0
    %171 = vmatprep.subr.mxu0 0.0
    %172 = vmatpush1.msra.mxu0 0.0
    %173 = vmatprep.subr.mxu0 0.0
    %174 = vmatpush1.msra.mxu0 0.0
    %175 = vmatprep.subr.mxu0 0.0
    %176 = vmatpush1.msra.mxu0 0.0
    %177 = vmatprep.subr.mxu0 0.0
    %178 = vmatpush1.msra.mxu0 0.0
    %179 = vmatprep.subr.mxu0 0.0
    %180 = vmatpush1.msra.mxu0 0.0
    %181 = vmatprep.subr.mxu0 0.0
    %182 = vmatpush1.msra.mxu0 0.0
    %183 = vmatprep.subr.mxu0 0.0
    %184 = vmatpush1.msra.mxu0 0.0
    %185 = vmatprep.subr.mxu0 0.0
    %186 = vmatpush1.msra.mxu0 0.0
    %187 = vmatprep.subr.mxu0 0.0
    %188 = vmatpush1.msra.mxu0 0.0
    %189 = vmatprep.subr.mxu0 0.0
    %190 = vmatpush1.msra.mxu0 0.0
    %191 = vmatprep.subr.mxu0 0.0
    %192 = vmatpush1.msra.mxu0 0.0
    %193 = vmatprep.subr.mxu0 0.0
    %194 = vmatpush1.msra.mxu0 0.0
    %195 = vmatprep.subr.mxu0 0.0
    %196 = vmatpush1.msra.mxu0 0.0
    %197 = vmatprep.subr.mxu0 0.0
    %198 = vmatpush1.msra.mxu0 0.0
    %199 = vmatprep.subr.mxu0 0.0
    %200 = vmatpush1.msra.mxu0 0.0
    %201 = vmatprep.subr.mxu0 0.0
    %202 = vmatpush1.msra.mxu0 0.0
    %203 = vmatprep.subr.mxu0 0.0
    %204 = vmatpush1.msra.mxu0 0.0
    %205 = vmatprep.subr.mxu0 0.0
    %206 = vmatpush1.msra.mxu0 0.0
    %207 = vmatprep.subr.mxu0 0.0
    %208 = vmatpush1.msra.mxu0 0.0
    %209 = vmatprep.subr.mxu0 0.0
    %210 = vmatpush1.msra.mxu0 0.0
    %211 = vmatprep.subr.mxu0 0.0
    %212 = vmatpush1.msra.mxu0 0.0
    %213 = vmatprep.subr.mxu0 0.0
    %214 = vmatpush1.msra.mxu0 0.0
    %215 = vmatprep.subr.mxu0 0.0
    %216 = vmatpush1.msra.mxu0 0.0
    %217 = vmatprep.subr.mxu0 0.0
    %218 = vmatpush1.msra.mxu0 0.0
    %219 = vmatprep.mubr.f32.mxu0 0.0
    %220 = vmatmul.mubr.f32.gmra.mrb[0].mxu0 %v153
    %v221 = vpop.f32.mrb[0].mxu0
    %v222 = vadd.f32 %v149, %v221
    %v223 = vpop.f32.mrb[0].mxu0
    %224 = vdwg.mxu0
    %v225 = vmax.f32 %v222, 0.0
    %v226 = vld [vmem:[%s3] sm:$0xff]
    %v227 = vld [vmem:[%s3 + $0x8] sm:$0xff]
    %v228 = vld [vmem:[%s3 + $0x10] sm:$0xff]
    %v229 = vld [vmem:[%s3 + $0x18] sm:$0xff]
    %v230 = vld [vmem:[%s4] sm:$0xff]
    %v231 = vld [vmem:[%s4 + $0x8] sm:$0xff]
    %v232 = vld [vmem:[%s4 + $0x10] sm:$0xff]
    %v233 = vld [vmem:[%s4 + $0x18] sm:$0xff]
    %235 = vset.pattern.permute.xlu0 0
    %236 = vperm.xlu0 %235, %v230
    %v237 = vpop.permute.xlu0 %236
    %240 = vset.pattern.permute.xlu0 0
    %241 = vperm.xlu0 %240, %v231
    %v242 = vpop.permute.xlu0 %241
    %245 = vset.pattern.permute.xlu0 0
    %246 = vperm.xlu0 %245, %v232
    %v247 = vpop.permute.xlu0 %246
    %250 = vset.pattern.permute.xlu0 0
    %251 = vperm.xlu0 %250, %v233
    %v252 = vpop.permute.xlu0 %251
    %v255 = vsel %vm134, %v226, 0
    %v258 = vsel %vm134, %v227, 0
    %v261 = vsel %vm134, %v228, 0
    %v264 = vsel %vm134, %v229, 0
    %vm266 = vcmask 1041408
    %v268 = vsel %vm266, %v225, 0
    %270 = vmatprep.subr.mxu0 0.0
    %271 = vmatpush1.msra.mxu0 %v268
    %272 = vmatprep.subr.mxu0 0.0
    %273 = vmatpush1.msra.mxu0 0.0
    %274 = vmatprep.subr.mxu0 0.0
    %275 = vmatpush1.msra.mxu0 0.0
    %276 = vmatprep.subr.mxu0 0.0
    %277 = vmatpush1.msra.mxu0 0.0
    %278 = vmatprep.subr.mxu0 0.0
    %279 = vmatpush1.msra.mxu0 0.0
    %280 = vmatprep.subr.mxu0 0.0
    %281 = vmatpush1.msra.mxu0 0.0
    %282 = vmatprep.subr.mxu0 0.0
    %283 = vmatpush1.msra.mxu0 0.0
    %284 = vmatprep.subr.mxu0 0.0
    %285 = vmatpush1.msra.mxu0 0.0
    %286 = vmatprep.subr.mxu0 0.0
    %287 = vmatpush1.msra.mxu0 0.0
    %288 = vmatprep.subr.mxu0 0.0
    %289 = vmatpush1.msra.mxu0 0.0
    %290 = vmatprep.subr.mxu0 0.0
    %291 = vmatpush1.msra.mxu0 0.0
    %292 = vmatprep.subr.mxu0 0.0
    %293 = vmatpush1.msra.mxu0 0.0
    %294 = vmatprep.subr.mxu0 0.0
    %295 = vmatpush1.msra.mxu0 0.0
    %296 = vmatprep.subr.mxu0 0.0
    %297 = vmatpush1.msra.mxu0 0.0
    %298 = vmatprep.subr.mxu0 0.0
    %299 = vmatpush1.msra.mxu0 0.0
    %300 = vmatprep.subr.mxu0 0.0
    %301 = vmatpush1.msra.mxu0 0.0
    %302 = vmatprep.subr.mxu0 0.0
    %303 = vmatpush1.msra.mxu0 0.0
    %304 = vmatprep.subr.mxu0 0.0
    %305 = vmatpush1.msra.mxu0 0.0
    %306 = vmatprep.subr.mxu0 0.0
    %307 = vmatpush1.msra.mxu0 0.0
    %308 = vmatprep.subr.mxu0 0.0
    %309 = vmatpush1.msra.mxu0 0.0
    %310 = vmatprep.subr.mxu0 0.0
    %311 = vmatpush1.msra.mxu0 0.0
    %312 = vmatprep.subr.mxu0 0.0
    %313 = vmatpush1.msra.mxu0 0.0
    %314 = vmatprep.subr.mxu0 0.0
    %315 = vmatpush1.msra.mxu0 0.0
    %316 = vmatprep.subr.mxu0 0.0
    %317 = vmatpush1.msra.mxu0 0.0
    %318 = vmatprep.subr.mxu0 0.0
    %319 = vmatpush1.msra.mxu0 0.0
    %320 = vmatprep.subr.mxu0 0.0
    %321 = vmatpush1.msra.mxu0 0.0
    %322 = vmatprep.subr.mxu0 0.0
    %323 = vmatpush1.msra.mxu0 0.0
    %324 = vmatprep.subr.mxu0 0.0
    %325 = vmatpush1.msra.mxu0 0.0
    %326 = vmatprep.subr.mxu0 0.0
    %327 = vmatpush1.msra.mxu0 0.0
    %328 = vmatprep.subr.mxu0 0.0
    %329 = vmatpush1.msra.mxu0 0.0
    %330 = vmatprep.subr.mxu0 0.0
    %331 = vmatpush1.msra.mxu0 0.0
    %332 = vmatprep.subr.mxu0 0.0
    %333 = vmatpush1.msra.mxu0 0.0
    %334 = vmatprep.mubr.f32.mxu0 0.0
    %335 = vmatmul.mubr.f32.gmra.mrb[0].mxu0 %v255
    %v336 = vpop.f32.mrb[0].mxu0
    %v337 = vadd.f32 %v237, %v336
    %v338 = vpop.f32.mrb[0].mxu0
    %339 = vmatprep.mubr.f32.mxu0 0.0
    %340 = vmatmul.mubr.f32.gmra.mrb[0].mxu0 %v258
    %v341 = vpop.f32.mrb[0].mxu0
    %v342 = vadd.f32 %v242, %v341
    %v343 = vpop.f32.mrb[0].mxu0
    %344 = vmatprep.mubr.f32.mxu0 0.0
    %345 = vmatmul.mubr.f32.gmra.mrb[0].mxu0 %v261
    %v346 = vpop.f32.mrb[0].mxu0
    %v347 = vadd.f32 %v247, %v346
    %v348 = vpop.f32.mrb[0].mxu0
    %349 = vmatprep.mubr.f32.mxu0 0.0
    %350 = vmatmul.mubr.f32.gmra.mrb[0].mxu0 %v264
    %v351 = vpop.f32.mrb[0].mxu0
    %v352 = vadd.f32 %v252, %v351
    %v353 = vpop.f32.mrb[0].mxu0
    %354 = vdwg.mxu0
    %359 = vrot.lane.b32.xlu0 %v337, 126
    %v360 = vpop.permute.xlu0 %359
    %361 = vrot.lane.b32.xlu0 %v342, 126
    %v362 = vpop.permute.xlu0 %361
    %363 = vrot.lane.b32.xlu0 %v347, 126
    %v364 = vpop.permute.xlu0 %363
    %365 = vrot.lane.b32.xlu0 %v352, 126
    %v366 = vpop.permute.xlu0 %365
    %v371 = vadd.f32 %v337, %v360
    %v372 = vadd.f32 %v342, %v362
    %v373 = vadd.f32 %v347, %v364
    %v374 = vadd.f32 %v352, %v366
    %v375 = vxor.u32 %v371, 2147483648
    %v376 = vxor.u32 %v372, 2147483648
    %v377 = vxor.u32 %v373, 2147483648
    %v378 = vxor.u32 %v374, 2147483648
    %v379 = vmul.f32 %v375, 1.442695
    %v380 = vpow.pop %v379
    %v381 = vmul.f32 %v376, 1.442695
    %v382 = vpow.pop %v381
    %v383 = vmul.f32 %v377, 1.442695
    %v384 = vpow.pop %v383
    %v385 = vmul.f32 %v378, 1.442695
    %v386 = vpow.pop %v385
    %v387 = vadd.f32 %v380, 1.0
    %v388 = vadd.f32 %v382, 1.0
    %v389 = vadd.f32 %v384, 1.0
    %v390 = vadd.f32 %v386, 1.0
    %v391 = vrcp.pop %v387
    %v392 = vmul.f32 1.0, %v391
    %v393 = vrcp.pop %v388
    %v394 = vmul.f32 1.0, %v393
    %v395 = vrcp.pop %v389
    %v396 = vmul.f32 1.0, %v395
    %v397 = vrcp.pop %v390
    %v398 = vmul.f32 1.0, %v397
    %400 = vset.pattern.permute.xlu0 0
    %401 = vperm.xlu0 %400, %v392
    %v402 = vpop.permute.xlu0 %401
    %405 = vset.pattern.permute.xlu0 0
    %406 = vperm.xlu0 %405, %v394
    %v407 = vpop.permute.xlu0 %406
    %410 = vset.pattern.permute.xlu0 0
    %411 = vperm.xlu0 %410, %v396
    %v412 = vpop.permute.xlu0 %411
    %415 = vset.pattern.permute.xlu0 0
    %416 = vperm.xlu0 %415, %v398
    %v417 = vpop.permute.xlu0 %416
    %v419 = vmul.f32 %v56, %v402
    %v420 = vmul.f32 %v57, %v402
    %v421 = vmul.f32 %v58, %v407
    %v422 = vmul.f32 %v59, %v407
    %v423 = vmul.f32 %v60, %v412
    %v424 = vmul.f32 %v61, %v412
    %v425 = vmul.f32 %v62, %v417
    %v426 = vmul.f32 %v63, %v417
    %427 = vset.pattern.permute.xlu0 1
    %428 = vperm.xlu0 %427, %v392
    %v429 = vpop.permute.xlu0 %428
    %431 = vset.pattern.permute.xlu0 1
    %432 = vperm.xlu0 %431, %v394
    %v433 = vpop.permute.xlu0 %432
    %435 = vset.pattern.permute.xlu0 1
    %436 = vperm.xlu0 %435, %v396
    %v437 = vpop.permute.xlu0 %436
    %439 = vset.pattern.permute.xlu0 1
    %440 = vperm.xlu0 %439, %v398
    %v441 = vpop.permute.xlu0 %440
    %v443 = vmul.f32 %v64, %v429
    %v444 = vmul.f32 %v65, %v429
    %v445 = vmul.f32 %v66, %v433
    %v446 = vmul.f32 %v67, %v433
    %v447 = vmul.f32 %v68, %v437
    %v448 = vmul.f32 %v69, %v437
    %v449 = vmul.f32 %v70, %v441
    %v450 = vmul.f32 %v71, %v441
    %v451 = vadd.f32 %v419, %v421
    %v452 = vadd.f32 %v451, %v423
    %v453 = vadd.f32 %v452, %v425
    %v454 = vrot.slane %v453, 4
    %v455 = vadd.f32 %v453, %v454
    %v456 = vrot.slane %v455, 2
    %v457 = vadd.f32 %v455, %v456
    %v458 = vrot.slane %v457, 1
    %v459 = vadd.f32 %v457, %v458
    %v460 = vadd.f32 %v420, %v422
    %v461 = vadd.f32 %v460, %v424
    %v462 = vadd.f32 %v461, %v426
    %v463 = vrot.slane %v462, 4
    %v464 = vadd.f32 %v462, %v463
    %v465 = vrot.slane %v464, 2
    %v466 = vadd.f32 %v464, %v465
    %v467 = vrot.slane %v466, 1
    %v468 = vadd.f32 %v466, %v467
    %v469 = vadd.f32 %v443, %v445
    %v470 = vadd.f32 %v469, %v447
    %v471 = vadd.f32 %v470, %v449
    %v472 = vrot.slane %v471, 4
    %v473 = vadd.f32 %v471, %v472
    %v474 = vrot.slane %v473, 2
    %v475 = vadd.f32 %v473, %v474
    %v476 = vrot.slane %v475, 1
    %v477 = vadd.f32 %v475, %v476
    %v478 = vadd.f32 %v444, %v446
    %v479 = vadd.f32 %v478, %v448
    %v480 = vadd.f32 %v479, %v450
    %v481 = vrot.slane %v480, 4
    %v482 = vadd.f32 %v480, %v481
    %v483 = vrot.slane %v482, 2
    %v484 = vadd.f32 %v482, %v483
    %v485 = vrot.slane %v484, 1
    %v486 = vadd.f32 %v484, %v485
    %v487 = vrcp.pop 32.0
    %v488 = vmul.f32 %v459, %v487
    %v489 = vmul.f32 %v468, %v487
    %v490 = vmul.f32 %v477, %v487
    %v491 = vmul.f32 %v486, %v487
    %v492 = vmax.f32 %v419, %v421
    %v493 = vmax.f32 %v492, %v423
    %v494 = vmax.f32 %v493, %v425
    %v495 = vrot.slane %v494, 4
    %v496 = vmax.f32 %v494, %v495
    %v497 = vrot.slane %v496, 2
    %v498 = vmax.f32 %v496, %v497
    %v499 = vrot.slane %v498, 1
    %v500 = vmax.f32 %v498, %v499
    %v501 = vmax.f32 %v420, %v422
    %v502 = vmax.f32 %v501, %v424
    %v503 = vmax.f32 %v502, %v426
    %v504 = vrot.slane %v503, 4
    %v505 = vmax.f32 %v503, %v504
    %v506 = vrot.slane %v505, 2
    %v507 = vmax.f32 %v505, %v506
    %v508 = vrot.slane %v507, 1
    %v509 = vmax.f32 %v507, %v508
    %v510 = vmax.f32 %v443, %v445
    %v511 = vmax.f32 %v510, %v447
    %v512 = vmax.f32 %v511, %v449
    %v513 = vrot.slane %v512, 4
    %v514 = vmax.f32 %v512, %v513
    %v515 = vrot.slane %v514, 2
    %v516 = vmax.f32 %v514, %v515
    %v517 = vrot.slane %v516, 1
    %v518 = vmax.f32 %v516, %v517
    %v519 = vmax.f32 %v444, %v446
    %v520 = vmax.f32 %v519, %v448
    %v521 = vmax.f32 %v520, %v450
    %v522 = vrot.slane %v521, 4
    %v523 = vmax.f32 %v521, %v522
    %v524 = vrot.slane %v523, 2
    %v525 = vmax.f32 %v523, %v524
    %v526 = vrot.slane %v525, 1
    %v527 = vmax.f32 %v525, %v526
    %vm532 = vcmask 1041409
    %v533 = vsel %vm532, %v490, %v488
    %v534 = vsel %vm532, %v491, %v489
    %v541 = vsel %vm532, %v518, %v500
    %v542 = vsel %vm532, %v527, %v509
    %v545 = vld [vmem:[#allocation6] sm:$0xff]
    %v546 = vld [vmem:[#allocation6 + $0x8] sm:$0xff]
    %v547 = vld [vmem:[#allocation6 + $0x10] sm:$0xff]
    %v548 = vld [vmem:[#allocation6 + $0x18] sm:$0xff]
    %v549 = vld [vmem:[#allocation6 + $0x20] sm:$0xff]
    %v550 = vld [vmem:[#allocation6 + $0x28] sm:$0xff]
    %v551 = vld [vmem:[#allocation6 + $0x30] sm:$0xff]
    %v552 = vld [vmem:[#allocation6 + $0x38] sm:$0xff]
    %v553 = vld [vmem:[#allocation6 + $0x40] sm:$0xff]
    %v554 = vld [vmem:[#allocation6 + $0x48] sm:$0xff]
    %v555 = vld [vmem:[#allocation6 + $0x50] sm:$0xff]
    %v556 = vld [vmem:[#allocation6 + $0x58] sm:$0xff]
    %v557 = vld [vmem:[#allocation6 + $0x60] sm:$0xff]
    %v558 = vld [vmem:[#allocation6 + $0x68] sm:$0xff]
    %v559 = vld [vmem:[#allocation6 + $0x70] sm:$0xff]
    %v560 = vld [vmem:[#allocation6 + $0x78] sm:$0xff]
    %v561 = vld [vmem:[#allocation6 + $0x80] sm:$0xff]
    %v562 = vld [vmem:[#allocation6 + $0x88] sm:$0xff]
    %v563 = vld [vmem:[#allocation6 + $0x90] sm:$0xff]
    %v564 = vld [vmem:[#allocation6 + $0x98] sm:$0xff]
    %v565 = vld [vmem:[#allocation6 + $0xa0] sm:$0xff]
    %v566 = vld [vmem:[#allocation6 + $0xa8] sm:$0xff]
    %v567 = vld [vmem:[#allocation6 + $0xb0] sm:$0xff]
    %v568 = vld [vmem:[#allocation6 + $0xb8] sm:$0xff]
    %v569 = vld [vmem:[#allocation6 + $0xc0] sm:$0xff]
    %v570 = vld [vmem:[#allocation6 + $0xc8] sm:$0xff]
    %v571 = vld [vmem:[#allocation6 + $0xd0] sm:$0xff]
    %v572 = vld [vmem:[#allocation6 + $0xd8] sm:$0xff]
    %v573 = vld [vmem:[#allocation6 + $0xe0] sm:$0xff]
    %v574 = vld [vmem:[#allocation6 + $0xe8] sm:$0xff]
    %v575 = vld [vmem:[#allocation6 + $0xf0] sm:$0xff]
    %v576 = vld [vmem:[#allocation6 + $0xf8] sm:$0xff]
    %v577 = vld [vmem:[#allocation6 + $0x100] sm:$0xff]
    %v578 = vld [vmem:[#allocation6 + $0x108] sm:$0xff]
    %v579 = vld [vmem:[#allocation6 + $0x110] sm:$0xff]
    %v580 = vld [vmem:[#allocation6 + $0x118] sm:$0xff]
    %v581 = vld [vmem:[#allocation6 + $0x120] sm:$0xff]
    %v582 = vld [vmem:[#allocation6 + $0x128] sm:$0xff]
    %v583 = vld [vmem:[#allocation6 + $0x130] sm:$0xff]
    %v584 = vld [vmem:[#allocation6 + $0x138] sm:$0xff]
    %v585 = vld [vmem:[#allocation6 + $0x140] sm:$0xff]
    %v586 = vld [vmem:[#allocation6 + $0x148] sm:$0xff]
    %v587 = vld [vmem:[#allocation6 + $0x150] sm:$0xff]
    %v588 = vld [vmem:[#allocation6 + $0x158] sm:$0xff]
    %v589 = vld [vmem:[#allocation6 + $0x160] sm:$0xff]
    %v590 = vld [vmem:[#allocation6 + $0x168] sm:$0xff]
    %v591 = vld [vmem:[#allocation6 + $0x170] sm:$0xff]
    %v592 = vld [vmem:[#allocation6 + $0x178] sm:$0xff]
    %v593 = vld [vmem:[#allocation6 + $0x180] sm:$0xff]
    %v594 = vld [vmem:[#allocation6 + $0x188] sm:$0xff]
    %v595 = vld [vmem:[#allocation6 + $0x190] sm:$0xff]
    %v596 = vld [vmem:[#allocation6 + $0x198] sm:$0xff]
    %v597 = vld [vmem:[#allocation6 + $0x1a0] sm:$0xff]
    %v598 = vld [vmem:[#allocation6 + $0x1a8] sm:$0xff]
    %v599 = vld [vmem:[#allocation6 + $0x1b0] sm:$0xff]
    %v600 = vld [vmem:[#allocation6 + $0x1b8] sm:$0xff]
    %v601 = vld [vmem:[#allocation6 + $0x1c0] sm:$0xff]
    %v602 = vld [vmem:[#allocation6 + $0x1c8] sm:$0xff]
    %v603 = vld [vmem:[#allocation6 + $0x1d0] sm:$0xff]
    %v604 = vld [vmem:[#allocation6 + $0x1d8] sm:$0xff]
    %v605 = vld [vmem:[#allocation6 + $0x1e0] sm:$0xff]
    %v606 = vld [vmem:[#allocation6 + $0x1e8] sm:$0xff]
    %v607 = vld [vmem:[#allocation6 + $0x1f0] sm:$0xff]
    %v608 = vld [vmem:[#allocation6 + $0x1f8] sm:$0xff]
    %v609 = vld [vmem:[#allocation6 + $0x200] sm:$0xff]
    %v610 = vld [vmem:[#allocation6 + $0x208] sm:$0xff]
    %v611 = vld [vmem:[#allocation6 + $0x210] sm:$0xff]
    %v612 = vld [vmem:[#allocation6 + $0x218] sm:$0xff]
    %v613 = vld [vmem:[#allocation6 + $0x220] sm:$0xff]
    %v614 = vld [vmem:[#allocation6 + $0x228] sm:$0xff]
    %v615 = vld [vmem:[#allocation6 + $0x230] sm:$0xff]
    %v616 = vld [vmem:[#allocation6 + $0x238] sm:$0xff]
    %v617 = vld [vmem:[#allocation6 + $0x240] sm:$0xff]
    %v618 = vld [vmem:[#allocation6 + $0x248] sm:$0xff]
    %v619 = vld [vmem:[#allocation6 + $0x250] sm:$0xff]
    %v620 = vld [vmem:[#allocation6 + $0x258] sm:$0xff]
    %v621 = vld [vmem:[#allocation6 + $0x260] sm:$0xff]
    %v622 = vld [vmem:[#allocation6 + $0x268] sm:$0xff]
    %v623 = vld [vmem:[#allocation6 + $0x270] sm:$0xff]
    %v624 = vld [vmem:[#allocation6 + $0x278] sm:$0xff]
    %v625 = vld [vmem:[#allocation6 + $0x280] sm:$0xff]
    %v626 = vld [vmem:[#allocation6 + $0x288] sm:$0xff]
    %v627 = vld [vmem:[#allocation6 + $0x290] sm:$0xff]
    %v628 = vld [vmem:[#allocation6 + $0x298] sm:$0xff]
    %v629 = vld [vmem:[#allocation6 + $0x2a0] sm:$0xff]
    %v630 = vld [vmem:[#allocation6 + $0x2a8] sm:$0xff]
    %v631 = vld [vmem:[#allocation6 + $0x2b0] sm:$0xff]
    %v632 = vld [vmem:[#allocation6 + $0x2b8] sm:$0xff]
    %v633 = vld [vmem:[#allocation6 + $0x2c0] sm:$0xff]
    %v634 = vld [vmem:[#allocation6 + $0x2c8] sm:$0xff]
    %v635 = vld [vmem:[#allocation6 + $0x2d0] sm:$0xff]
    %v636 = vld [vmem:[#allocation6 + $0x2d8] sm:$0xff]
    %v637 = vld [vmem:[#allocation6 + $0x2e0] sm:$0xff]
    %v638 = vld [vmem:[#allocation6 + $0x2e8] sm:$0xff]
    %v639 = vld [vmem:[#allocation6 + $0x2f0] sm:$0xff]
    %v640 = vld [vmem:[#allocation6 + $0x2f8] sm:$0xff]
    %v641 = vld [vmem:[#allocation6 + $0x300] sm:$0xff]
    %v642 = vld [vmem:[#allocation6 + $0x308] sm:$0xff]
    %v643 = vld [vmem:[#allocation6 + $0x310] sm:$0xff]
    %v644 = vld [vmem:[#allocation6 + $0x318] sm:$0xff]
    %v645 = vld [vmem:[#allocation6 + $0x320] sm:$0xff]
    %v646 = vld [vmem:[#allocation6 + $0x328] sm:$0xff]
    %v647 = vld [vmem:[#allocation6 + $0x330] sm:$0xff]
    %v648 = vld [vmem:[#allocation6 + $0x338] sm:$0xff]
    %v649 = vld [vmem:[#allocation6 + $0x340] sm:$0xff]
    %v650 = vld [vmem:[#allocation6 + $0x348] sm:$0xff]
    %v651 = vld [vmem:[#allocation6 + $0x350] sm:$0xff]
    %v652 = vld [vmem:[#allocation6 + $0x358] sm:$0xff]
    %v653 = vld [vmem:[#allocation6 + $0x360] sm:$0xff]
    %v654 = vld [vmem:[#allocation6 + $0x368] sm:$0xff]
    %v655 = vld [vmem:[#allocation6 + $0x370] sm:$0xff]
    %v656 = vld [vmem:[#allocation6 + $0x378] sm:$0xff]
    %v657 = vld [vmem:[#allocation6 + $0x380] sm:$0xff]
    %v658 = vld [vmem:[#allocation6 + $0x388] sm:$0xff]
    %v659 = vld [vmem:[#allocation6 + $0x390] sm:$0xff]
    %v660 = vld [vmem:[#allocation6 + $0x398] sm:$0xff]
    %v661 = vld [vmem:[#allocation6 + $0x3a0] sm:$0xff]
    %v662 = vld [vmem:[#allocation6 + $0x3a8] sm:$0xff]
    %v663 = vld [vmem:[#allocation6 + $0x3b0] sm:$0xff]
    %v664 = vld [vmem:[#allocation6 + $0x3b8] sm:$0xff]
    %v665 = vld [vmem:[#allocation6 + $0x3c0] sm:$0xff]
    %v666 = vld [vmem:[#allocation6 + $0x3c8] sm:$0xff]
    %v667 = vld [vmem:[#allocation6 + $0x3d0] sm:$0xff]
    %v668 = vld [vmem:[#allocation6 + $0x3d8] sm:$0xff]
    %v669 = vld [vmem:[#allocation6 + $0x3e0] sm:$0xff]
    %v670 = vld [vmem:[#allocation6 + $0x3e8] sm:$0xff]
    %v671 = vld [vmem:[#allocation6 + $0x3f0] sm:$0xff]
    %v672 = vld [vmem:[#allocation6 + $0x3f8] sm:$0xff]
    %s673 = sld [smem:[#allocation2]]
    %v674 = vstv %s673
    %675 = vmatprep.subr.mxu0 %v546
    %676 = vmatpush1.msra.mxu0 %v545
    %677 = vmatprep.subr.mxu0 %v548
    %678 = vmatpush1.msra.mxu0 %v547
    %679 = vmatprep.subr.mxu0 %v550
    %680 = vmatpush1.msra.mxu0 %v549
    %681 = vmatprep.subr.mxu0 %v552
    %682 = vmatpush1.msra.mxu0 %v551
    %683 = vmatprep.subr.mxu0 %v554
    %684 = vmatpush1.msra.mxu0 %v553
    %685 = vmatprep.subr.mxu0 %v556
    %686 = vmatpush1.msra.mxu0 %v555
    %687 = vmatprep.subr.mxu0 %v558
    %688 = vmatpush1.msra.mxu0 %v557
    %689 = vmatprep.subr.mxu0 %v560
    %690 = vmatpush1.msra.mxu0 %v559
    %691 = vmatprep.subr.mxu0 %v562
    %692 = vmatpush1.msra.mxu0 %v561
    %693 = vmatprep.subr.mxu0 %v564
    %694 = vmatpush1.msra.mxu0 %v563
    %695 = vmatprep.subr.mxu0 %v566
    %696 = vmatpush1.msra.mxu0 %v565
    %697 = vmatprep.subr.mxu0 %v568
    %698 = vmatpush1.msra.mxu0 %v567
    %699 = vmatprep.subr.mxu0 %v570
    %700 = vmatpush1.msra.mxu0 %v569
    %701 = vmatprep.subr.mxu0 %v572
    %702 = vmatpush1.msra.mxu0 %v571
    %703 = vmatprep.subr.mxu0 %v574
    %704 = vmatpush1.msra.mxu0 %v573
    %705 = vmatprep.subr.mxu0 %v576
    %706 = vmatpush1.msra.mxu0 %v575
    %707 = vmatprep.subr.mxu0 %v578
    %708 = vmatpush1.msra.mxu0 %v577
    %709 = vmatprep.subr.mxu0 %v580
    %710 = vmatpush1.msra.mxu0 %v579
    %711 = vmatprep.subr.mxu0 %v582
    %712 = vmatpush1.msra.mxu0 %v581
    %713 = vmatprep.subr.mxu0 %v584
    %714 = vmatpush1.msra.mxu0 %v583
    %715 = vmatprep.subr.mxu0 %v586
    %716 = vmatpush1.msra.mxu0 %v585
    %717 = vmatprep.subr.mxu0 %v588
    %718 = vmatpush1.msra.mxu0 %v587
    %719 = vmatprep.subr.mxu0 %v590
    %720 = vmatpush1.msra.mxu0 %v589
    %721 = vmatprep.subr.mxu0 %v592
    %722 = vmatpush1.msra.mxu0 %v591
    %723 = vmatprep.subr.mxu0 %v594
    %724 = vmatpush1.msra.mxu0 %v593
    %725 = vmatprep.subr.mxu0 %v596
    %726 = vmatpush1.msra.mxu0 %v595
    %727 = vmatprep.subr.mxu0 %v598
    %728 = vmatpush1.msra.mxu0 %v597
    %729 = vmatprep.subr.mxu0 %v600
    %730 = vmatpush1.msra.mxu0 %v599
    %731 = vmatprep.subr.mxu0 %v602
    %732 = vmatpush1.msra.mxu0 %v601
    %733 = vmatprep.subr.mxu0 %v604
    %734 = vmatpush1.msra.mxu0 %v603
    %735 = vmatprep.subr.mxu0 %v606
    %736 = vmatpush1.msra.mxu0 %v605
    %737 = vmatprep.subr.mxu0 %v608
    %738 = vmatpush1.msra.mxu0 %v607
    %739 = vmatprep.mubr.f32.mxu0 %v534
    %740 = vmatmul.mubr.f32.gmra.mrb[0].mxu0 %v533
    %v741 = vpop.f32.mrb[0].mxu0
    %v742 = vadd.f32 %v674, %v741
    %v743 = vpop.f32.mrb[0].mxu0
    %v744 = vadd.f32 %v674, %v743
    %745 = vdwg.mxu0
    %746 = vmatprep.subr.mxu0 %v610
    %747 = vmatpush1.msra.mxu0 %v609
    %748 = vmatprep.subr.mxu0 %v612
    %749 = vmatpush1.msra.mxu0 %v611
    %750 = vmatprep.subr.mxu0 %v614
    %751 = vmatpush1.msra.mxu0 %v613
    %752 = vmatprep.subr.mxu0 %v616
    %753 = vmatpush1.msra.mxu0 %v615
    %754 = vmatprep.subr.mxu0 %v618
    %755 = vmatpush1.msra.mxu0 %v617
    %756 = vmatprep.subr.mxu0 %v620
    %757 = vmatpush1.msra.mxu0 %v619
    %758 = vmatprep.subr.mxu0 %v622
    %759 = vmatpush1.msra.mxu0 %v621
    %760 = vmatprep.subr.mxu0 %v624
    %761 = vmatpush1.msra.mxu0 %v623
    %762 = vmatprep.subr.mxu0 %v626
    %763 = vmatpush1.msra.mxu0 %v625
    %764 = vmatprep.subr.mxu0 %v628
    %765 = vmatpush1.msra.mxu0 %v627
    %766 = vmatprep.subr.mxu0 %v630
    %767 = vmatpush1.msra.mxu0 %v629
    %768 = vmatprep.subr.mxu0 %v632
    %769 = vmatpush1.msra.mxu0 %v631
    %770 = vmatprep.subr.mxu0 %v634
    %771 = vmatpush1.msra.mxu0 %v633
    %772 = vmatprep.subr.mxu0 %v636
    %773 = vmatpush1.msra.mxu0 %v635
    %774 = vmatprep.subr.mxu0 %v638
    %775 = vmatpush1.msra.mxu0 %v637
    %776 = vmatprep.subr.mxu0 %v640
    %777 = vmatpush1.msra.mxu0 %v639
    %778 = vmatprep.subr.mxu0 %v642
    %779 = vmatpush1.msra.mxu0 %v641
    %780 = vmatprep.subr.mxu0 %v644
    %781 = vmatpush1.msra.mxu0 %v643
    %782 = vmatprep.subr.mxu0 %v646
    %783 = vmatpush1.msra.mxu0 %v645
    %784 = vmatprep.subr.mxu0 %v648
    %785 = vmatpush1.msra.mxu0 %v647
    %786 = vmatprep.subr.mxu0 %v650
    %787 = vmatpush1.msra.mxu0 %v649
    %788 = vmatprep.subr.mxu0 %v652
    %789 = vmatpush1.msra.mxu0 %v651
    %790 = vmatprep.subr.mxu0 %v654
    %791 = vmatpush1.msra.mxu0 %v653
    %792 = vmatprep.subr.mxu0 %v656
    %793 = vmatpush1.msra.mxu0 %v655
    %794 = vmatprep.subr.mxu0 %v658
    %795 = vmatpush1.msra.mxu0 %v657
    %796 = vmatprep.subr.mxu0 %v660
    %797 = vmatpush1.msra.mxu0 %v659
    %798 = vmatprep.subr.mxu0 %v662
    %799 = vmatpush1.msra.mxu0 %v661
    %800 = vmatprep.subr.mxu0 %v664
    %801 = vmatpush1.msra.mxu0 %v663
    %802 = vmatprep.subr.mxu0 %v666
    %803 = vmatpush1.msra.mxu0 %v665
    %804 = vmatprep.subr.mxu0 %v668
    %805 = vmatpush1.msra.mxu0 %v667
    %806 = vmatprep.subr.mxu0 %v670
    %807 = vmatpush1.msra.mxu0 %v669
    %808 = vmatprep.subr.mxu0 %v672
    %809 = vmatpush1.msra.mxu0 %v671
    %810 = vmatprep.mubr.f32.mxu0 %v542
    %811 = vmatmul.mubr.f32.gmra.mrb[0].mxu0 %v541
    %v812 = vpop.f32.mrb[0].mxu0
    %v813 = vadd.f32 %v742, %v812
    %v814 = vpop.f32.mrb[0].mxu0
    %v815 = vadd.f32 %v744, %v814
    %816 = vdwg.mxu0
    %v817 = vxor.u32 %v813, 2147483648
    %v818 = vxor.u32 %v815, 2147483648
    %v819 = vmul.f32 %v817, 1.442695
    %v820 = vpow.pop %v819
    %v821 = vmul.f32 %v818, 1.442695
    %v822 = vpow.pop %v821
    %v823 = vadd.f32 %v820, 1.0
    %v824 = vadd.f32 %v822, 1.0
    %v825 = vrcp.pop %v823
    %v826 = vmul.f32 1.0, %v825
    %v827 = vrcp.pop %v824
    %v828 = vmul.f32 1.0, %v827
    %v831 = vcombine.low %v826, %v828
    %v833 = vunpack.c.l.s4 1966171168
    %v834 = vunpack.c.0.s8 %v833
    %v835 = vlaneseq
    %v836 = vshrl.u32 %v835, 7
    %v837 = vsub.s32 %v834, %v836
    %v838 = vrot.slane %v831, %v837
    %v839 = vcombine.high %v838, %v838
    %v841 = vunpack.c.l.s4 1966171168
    %v842 = vunpack.c.0.s8 %v841
    %v843 = vlaneseq
    %v844 = vshrl.u32 %v843, 7
    %v845 = vsub.s32 %v842, %v844
    %v846 = vrot.slane %v838, %v845
    %v848 = vunpack.c.l.s4 1966171168
    %v849 = vunpack.c.0.s8 %v848
    %v850 = vlaneseq
    %v851 = vshrl.u32 %v850, 7
    %v852 = vsub.s32 %v849, %v851
    %v853 = vrot.slane %v839, %v852
    %v854 = vlaneseq
    %v855 = vshrl.u32 %v854, 7
    %v856 = vsub.s32 0, %v855
    %v857 = vrot.slane %v846, %v856
    %v858 = vlaneseq
    %v859 = vshrl.u32 %v858, 7
    %v860 = vsub.s32 1, %v859
    %v861 = vrot.slane %v846, %v860
    %v862 = vlaneseq
    %v863 = vshrl.u32 %v862, 7
    %v864 = vsub.s32 0, %v863
    %v865 = vrot.slane %v853, %v864
    %v866 = vlaneseq
    %v867 = vshrl.u32 %v866, 7
    %v868 = vsub.s32 1, %v867
    %v869 = vrot.slane %v853, %v868
    %v874 = vmul.f32 %v419, %v857
    %v875 = vmul.f32 %v420, %v861
    %v876 = vmul.f32 %v421, %v857
    %v877 = vmul.f32 %v422, %v861
    %v878 = vmul.f32 %v423, %v857
    %v879 = vmul.f32 %v424, %v861
    %v880 = vmul.f32 %v425, %v857
    %v881 = vmul.f32 %v426, %v861
    %v882 = vmul.f32 %v443, %v865
    %v883 = vmul.f32 %v444, %v869
    %v884 = vmul.f32 %v445, %v865
    %v885 = vmul.f32 %v446, %v869
    %v886 = vmul.f32 %v447, %v865
    %v887 = vmul.f32 %v448, %v869
    %v888 = vmul.f32 %v449, %v865
    %v889 = vmul.f32 %v450, %v869
    %890 = vst [vmem:[#allocation8] sm:$0xff] %v874
    %891 = vst [vmem:[#allocation8 + $0x8] sm:$0xff] %v875
    %892 = vst [vmem:[#allocation8 + $0x10] sm:$0xff] %v876
    %893 = vst [vmem:[#allocation8 + $0x18] sm:$0xff] %v877
    %894 = vst [vmem:[#allocation8 + $0x20] sm:$0xff] %v878
    %895 = vst [vmem:[#allocation8 + $0x28] sm:$0xff] %v879
    %896 = vst [vmem:[#allocation8 + $0x30] sm:$0xff] %v880
    %897 = vst [vmem:[#allocation8 + $0x38] sm:$0xff] %v881
    %898 = vst [vmem:[#allocation8 + $0x40] sm:$0xff] %v882
    %899 = vst [vmem:[#allocation8 + $0x48] sm:$0xff] %v883
    %900 = vst [vmem:[#allocation8 + $0x50] sm:$0xff] %v884
    %901 = vst [vmem:[#allocation8 + $0x58] sm:$0xff] %v885
    %902 = vst [vmem:[#allocation8 + $0x60] sm:$0xff] %v886
    %903 = vst [vmem:[#allocation8 + $0x68] sm:$0xff] %v887
    %904 = vst [vmem:[#allocation8 + $0x70] sm:$0xff] %v888
    %905 = vst [vmem:[#allocation8 + $0x78] sm:$0xff] %v889
    // Predicated region
    $region38: #{tpu_custom_call.1} parent=1 // pred_check
      _
    $region39: #{tpu_custom_call.1} parent=1 // pred_check_branch
      %907 = sbr.rel (0) target = $region41
    $region40: #{tpu_custom_call.1} parent=1 // pred_region
      %s909 = ssub.s32 2048, 2048
      %910 = vsyncadd [#allocation5], %s909
      %s911 = sshll.u32 [#allocation8], 4
      %s912 = int_to_ptr.vmem [resolvable:$true] %s911
      %917 = dma.vmem_to_hbm [thread:$0]  %s912, 2048, %s7, [#allocation5], 256, 256, 16
    $region41: #{tpu_custom_call.1} parent=1 // pred_fallthru
      _
    // Predicated region
    $region42: #{tpu_custom_call.1} parent=1 // pred_check
      _
    $region43: #{tpu_custom_call.1} parent=1 // pred_check_branch
      %919 = sbr.rel (0) target = $region45
    $region44: #{tpu_custom_call.1} parent=1 // pred_region
      %920 = dma.done [#allocation5], 2048
    $region45: #{tpu_custom_call.1} parent=1 // pred_fallthru
      _
    %921 = vsyncpa [#allocation4], 1
    %922 = vsyncpa [#allocation7], 1
    %923 = vsyncpa [#allocation5], 1

</llo_original>
